<compile_context>
chip_gen: v6e
topology: v6e:2x2x1
jax: 0.10.0
libtpu: 0.0.40
codegen_flags: <defaults>
</compile_context>

<pallas_src>
import functools

import jax
import jax.numpy as jnp
from jax.experimental import pallas as pl
from jax.experimental.pallas import tpu as pltpu

_LANES = 128


def _round_up(x, m):
    return ((x + m - 1) // m) * m


def _detect_generation():
    """Best-effort TPU generation detection from the device kind string."""
    try:
        kind = jax.devices()[0].device_kind.lower()
    except Exception:
        return "unknown"
    if "v5e" in kind or "v5 lite" in kind or "v5lite" in kind:
        return "v5e"
    if "v6" in kind:
        return "v6e"
    if "v7" in kind or "tpu7" in kind:
        return "v7x"
    return "unknown"


def _mse_sum_kernel(ze_ref, zq_ref, out_ref, acc_ref, *,
                    tile_rows, blocks_per_core, m_rows, need_mask):
    c = pl.program_id(0)          # (mega)core axis  -- 'parallel'
    j = pl.program_id(1)          # reduction axis   -- 'arbitrary'

    @pl.when(j == 0)
    def _():
        acc_ref[...] = jnp.zeros_like(acc_ref)

    # Per-tile upcast; pure element-wise VPU work in the streaming loop.
    diff = zq_ref[...].astype(jnp.float32) - ze_ref[...].astype(jnp.float32)
    sq = diff * diff

    def fold(x):
        # (tile_rows,128) -> (8,128): groups of 8 sublane rows are whole f32
        # vregs, so this is a chain of element-wise vreg adds (no XLU work)
        # and the per-step accumulator RMW only touches a single 4 KiB vreg.
        return x.reshape(tile_rows // 8, 8, _LANES).sum(axis=0)

    if need_mask:
        # NOTE: row0 uses the UNCLAMPED logical block index (the clamp lives
        # only in the DMA index_map); duplicated / out-of-range rows must be
        # masked against the logical position or they would be double-counted.
        row0 = (c * blocks_per_core + j) * tile_rows

        @pl.when(row0 + tile_rows <= m_rows)        # fully in-bounds: no mask
        def _():
            acc_ref[...] += fold(sq)

        @pl.when(row0 + tile_rows > m_rows)         # tail / duplicated block
        def _():
            rows = row0 + jax.lax.broadcasted_iota(
                jnp.int32, (tile_rows, _LANES), 0)
            acc_ref[...] += fold(
                jnp.where(rows < m_rows, sq, jnp.float32(0.0)))
    else:
        acc_ref[...] += fold(sq)

    @pl.when(j == pl.num_programs(1) - 1)
    def _():
        out_ref[...] = acc_ref[...]


def quantizer_loss(z_e, z_q, commitment_cost, *, tile_rows=None, num_cores=None):
    """Returns (codebook_loss, commitment_loss) as f32 scalars."""
    assert z_e.shape == z_q.shape, "z_e and z_q must have identical shapes"
    n_elems = z_e.size
    if n_elems == 0:
        zero = jnp.float32(0.0)
        return zero, zero

    gen = _detect_generation()
    if num_cores is None:
        # v7x has two TensorCores per chip; v5e/v6e have one (a fake size-2
        # 'parallel' axis on a 1-TC chip is just an extra serial masked step).
        num_cores = 2 if gen == "v7x" else 1

    itemsize = max(z_e.dtype.itemsize, z_q.dtype.itemsize)
    min_itemsize = min(z_e.dtype.itemsize, z_q.dtype.itemsize)
    # dtype-aware sublane multiple: (8,128) f32, (16,128) bf16, (32,128) int8.
    sublane_mult = max(8, 32 // max(1, min_itemsize))

    if tile_rows is None:
        # HBM-bound reduction: per-input block bytes sized so the per-step DMA
        # dominates the ~0.35 us fixed grid-step overhead, while 2 inputs x 2
        # buffers (+ elementwise temporaries) stay comfortably inside each
        # chip's default scoped-VMEM limit.
        target_block_bytes = {
            "v7x": 2 << 20,
            "v6e": 2 << 20,
            "v5e": 1 << 20,   # 16 MiB scoped-VMEM default on v5e
        }.get(gen, 2 << 20)
        tile_rows = max(sublane_mult, target_block_bytes // (_LANES * itemsize))

    # Split off the (<128-element) lane tail and handle it in plain JAX, so the
    # kernel never needs a full-tensor zero-padding pass over HBM.
    flat_e = z_e.reshape(-1)
    flat_q = z_q.reshape(-1)
    n_main = (n_elems // _LANES) * _LANES

    tail_sum = jnp.float32(0.0)
    if n_main != n_elems:
        te = flat_e[n_main:].astype(jnp.float32)
        tq = flat_q[n_main:].astype(jnp.float32)
        tail_sum = jnp.sum((tq - te) ** 2)

    if n_main == 0:
        # Whole tensor is smaller than one lane row; no kernel needed.
        mse = tail_sum / jnp.float32(n_elems)
        return mse, jnp.float32(commitment_cost) * mse

    ze2d = (flat_e if n_main == n_elems else flat_e[:n_main]).reshape(-1, _LANES)
    zq2d = (flat_q if n_main == n_elems else flat_q[:n_main]).reshape(-1, _LANES)
    m_rows = ze2d.shape[0]

    tile_rows_eff = _round_up(
        min(tile_rows, _round_up(m_rows, sublane_mult)), sublane_mult)

    n_blocks = pl.cdiv(m_rows, tile_rows_eff)
    blocks_per_core = pl.cdiv(n_blocks, num_cores)
    # Mask needed iff some grid step covers rows past the end of the slab.
    need_mask = (num_cores * blocks_per_core * tile_rows_eff) > m_rows

    def in_index_map(c, j):
        # Clamp so no DMA targets a block fully outside the array; duplicated
        # / out-of-range rows are zeroed by the in-kernel mask (which uses the
        # UNCLAMPED logical row offset).
        return (jnp.minimum(c * blocks_per_core + j, n_blocks - 1), 0)

    kernel = functools.partial(
        _mse_sum_kernel,
        tile_rows=tile_rows_eff,
        blocks_per_core=blocks_per_core,
        m_rows=m_rows,
        need_mask=need_mask,
    )

    # TODO(synk): on v7x, confirm via xprof that the leading 'parallel' axis is
    # sharded across both TensorCores; if not, switch dimension_semantics to
    # (pltpu.CORE_PARALLEL, pltpu.ARBITRARY).
    partial_sums = pl.pallas_call(
        kernel,
        out_shape=jax.ShapeDtypeStruct((num_cores * 8, _LANES), jnp.float32),
        grid_spec=pltpu.PrefetchScalarGridSpec(
            num_scalar_prefetch=0,
            grid=(num_cores, blocks_per_core),
            in_specs=[
                pl.BlockSpec((tile_rows_eff, _LANES), in_index_map),
                pl.BlockSpec((tile_rows_eff, _LANES), in_index_map),
            ],
            out_specs=pl.BlockSpec((8, _LANES), lambda c, j: (c, 0)),
            scratch_shapes=[pltpu.VMEM((8, _LANES), jnp.float32)],
        ),
        compiler_params=pltpu.CompilerParams(
            dimension_semantics=("parallel", "arbitrary"),
        ),
    )(ze2d, zq2d)

    # Tiny epilogue in plain JAX: global sum (+ lane tail), mean, scaling.
    mse = (jnp.sum(partial_sums) + tail_sum) / jnp.float32(n_elems)
    codebook_loss = mse
    commitment_loss = jnp.float32(commitment_cost) * mse
    return codebook_loss, commitment_loss


if __name__ == "__main__":
    # Deterministic "parameter": commitment_cost from the module's __init__.
    commitment_cost = 0.25

    key = jax.random.PRNGKey(0)
    k1, k2, k3, k4 = jax.random.split(key, 4)

    # NCHW inputs, small shapes: batch=2, channels=4, spatial=16x16.
    z_e = jax.random.normal(k1, (2, 4, 16, 16), dtype=jnp.float32)
    z_q = jax.random.normal(k2, (2, 4, 16, 16), dtype=jnp.float32)

    codebook_loss, commitment_loss = quantizer_loss(z_e, z_q, commitment_cost)
    codebook_loss = jax.block_until_ready(codebook_loss)
    commitment_loss = jax.block_until_ready(commitment_loss)

    ref_mse = jnp.mean((z_q - z_e) ** 2)
    assert jnp.allclose(codebook_loss, ref_mse, rtol=1e-5, atol=1e-6)
    assert jnp.allclose(commitment_loss, commitment_cost * ref_mse,
                        rtol=1e-5, atol=1e-6)

    # Ragged (non-multiple-of-128) bf16 case exercising the lane-tail path and
    # dtype-aware sublane rounding.
    ze_b = jax.random.normal(k3, (3, 5, 7, 11), dtype=jnp.float32).astype(jnp.bfloat16)
    zq_b = jax.random.normal(k4, (3, 5, 7, 11), dtype=jnp.float32).astype(jnp.bfloat16)
    cb_b, cm_b = quantizer_loss(ze_b, zq_b, commitment_cost)
    cb_b = jax.block_until_ready(cb_b)
    ref_b = jnp.mean((zq_b.astype(jnp.float32) - ze_b.astype(jnp.float32)) ** 2)
    assert jnp.allclose(cb_b, ref_b, rtol=1e-5, atol=1e-6)
    assert jnp.allclose(cm_b, commitment_cost * ref_b, rtol=1e-5, atol=1e-6)

    print("KERNEL_OK")
</pallas_src>

<mosaic_0001>
module attributes {stable_mosaic.version = 11 : i64} {
  func.func @_mse_sum_kernel(%arg0: i32, %arg1: i32, %arg2: memref<16x128xf32, #tpu.memory_space<vmem>>, %arg3: memref<16x128xf32, #tpu.memory_space<vmem>>, %arg4: memref<8x128xf32, #tpu.memory_space<vmem>>, %arg5: memref<8x128xf32, #tpu.memory_space<vmem>>) attributes {dimension_semantics = [#tpu.dimension_semantics<parallel>, #tpu.dimension_semantics<arbitrary>], iteration_bounds = array<i64: 1, 1>, scalar_prefetch = 0 : i64, scratch_operands = 1 : i64, tpu.core_type = #tpu.core_type<tc>, window_params = [{transform_indices = @transform_0, window_bounds = array<i64: 16, 128>}, {transform_indices = @transform_1, window_bounds = array<i64: 16, 128>}, {transform_indices = @transform_2, window_bounds = array<i64: 8, 128>}]} {
    %c0_i32 = arith.constant 0 : i32
    %0 = arith.cmpi eq, %arg1, %c0_i32 : i32
    %1 = arith.extui %0 : i1 to i32
    %c0_i32_0 = arith.constant 0 : i32
    %2 = arith.cmpi ne, %1, %c0_i32_0 : i32
    scf.if %2 {
      %cst_10 = arith.constant 0.000000e+00 : f32
      %15 = vector.broadcast %cst_10 : f32 to vector<8x128xf32>
      %c0_11 = arith.constant 0 : index
      %c0_12 = arith.constant 0 : index
      %16 = vector.load %arg5[%c0_11, %c0_12] : memref<8x128xf32, #tpu.memory_space<vmem>>, vector<8x128xf32>
      tpu.vector_store %arg5[%c0_11, %c0_12], %15 {strides = array<i32>} : memref<8x128xf32, #tpu.memory_space<vmem>>, vector<8x128xf32>,
    } else {
    }
    %c0 = arith.constant 0 : index
    %c0_1 = arith.constant 0 : index
    %3 = vector.load %arg3[%c0, %c0_1] : memref<16x128xf32, #tpu.memory_space<vmem>>, vector<16x128xf32>
    %c0_2 = arith.constant 0 : index
    %c0_3 = arith.constant 0 : index
    %4 = vector.load %arg2[%c0_2, %c0_3] : memref<16x128xf32, #tpu.memory_space<vmem>>, vector<16x128xf32>
    %5 = arith.subf %3, %4 : vector<16x128xf32>
    %6 = arith.mulf %5, %5 : vector<16x128xf32>
    %c0_4 = arith.constant 0 : index
    %c0_5 = arith.constant 0 : index
    %7 = vector.load %arg5[%c0_4, %c0_5] : memref<8x128xf32, #tpu.memory_space<vmem>>, vector<8x128xf32>
    %8 = vector.shape_cast %6 : vector<16x128xf32> to vector<2x8x128xf32>
    %cst = arith.constant dense<0.000000e+00> : vector<8x128xf32>
    %9 = vector.multi_reduction <add>, %8, %cst [0] : vector<2x8x128xf32> to vector<8x128xf32>
    %10 = arith.addf %7, %9 : vector<8x128xf32>
    %c0_6 = arith.constant 0 : index
    %c0_7 = arith.constant 0 : index
    %11 = vector.load %arg5[%c0_6, %c0_7] : memref<8x128xf32, #tpu.memory_space<vmem>>, vector<8x128xf32>
    tpu.vector_store %arg5[%c0_6, %c0_7], %10 {strides = array<i32>} : memref<8x128xf32, #tpu.memory_space<vmem>>, vector<8x128xf32>,
    %c0_i32_8 = arith.constant 0 : i32
    %12 = arith.cmpi eq, %arg1, %c0_i32_8 : i32
    %13 = arith.extui %12 : i1 to i32
    %c0_i32_9 = arith.constant 0 : i32
    %14 = arith.cmpi ne, %13, %c0_i32_9 : i32
    scf.if %14 {
      %c0_10 = arith.constant 0 : index
      %c0_11 = arith.constant 0 : index
      %15 = vector.load %arg5[%c0_10, %c0_11] : memref<8x128xf32, #tpu.memory_space<vmem>>, vector<8x128xf32>
      %c0_12 = arith.constant 0 : index
      %c0_13 = arith.constant 0 : index
      %16 = vector.load %arg4[%c0_12, %c0_13] : memref<8x128xf32, #tpu.memory_space<vmem>>, vector<8x128xf32>
      tpu.vector_store %arg4[%c0_12, %c0_13], %15 {strides = array<i32>} : memref<8x128xf32, #tpu.memory_space<vmem>>, vector<8x128xf32>,
    } else {
    }
    return
  }
  func.func @transform_0(%arg0: i32, %arg1: i32) -> (i32, i32) {
    %c1_i32 = arith.constant 1 : i32
    %0 = arith.muli %arg0, %c1_i32 : i32
    %1 = arith.addi %0, %arg1 : i32
    %c0_i32 = arith.constant 0 : i32
    %2 = arith.minsi %1, %c0_i32 : i32
    %c0_i32_0 = arith.constant 0 : i32
    %c0_i32_1 = arith.constant 0 : i32
    return %2, %c0_i32_0 : i32, i32
  }
  func.func @transform_1(%arg0: i32, %arg1: i32) -> (i32, i32) {
    %c1_i32 = arith.constant 1 : i32
    %0 = arith.muli %arg0, %c1_i32 : i32
    %1 = arith.addi %0, %arg1 : i32
    %c0_i32 = arith.constant 0 : i32
    %2 = arith.minsi %1, %c0_i32 : i32
    %c0_i32_0 = arith.constant 0 : i32
    %c0_i32_1 = arith.constant 0 : i32
    return %2, %c0_i32_0 : i32, i32
  }
  func.func @transform_2(%arg0: i32, %arg1: i32) -> (i32, i32) {
    %c0_i32 = arith.constant 0 : i32
    %c0_i32_0 = arith.constant 0 : i32
    return %arg0, %c0_i32 : i32, i32
  }
}

</mosaic_0001>

<llo_original>
// kernel: tpu_custom_call.1
$region0: #{tpu_custom_call.1}
  #allocation0 [shape = 'u32[]', space=smem, size = 0x4, offset = 0x4, fixed_abs, tag = 'smem constant byte address 0x4 - core index']
  #allocation1 [shape = 'u32[144,128]{1,0:T(1,128)}', space=vmem, size = 0x12000, scoped, tag = 'internal scratch']
  #allocation2 [shape = 'f32[8,128]{1,0:T(8,128)}', space=vmem, size = 0x1000, scoped, tag = 'scratch operand']
  %s0 = inlined_call_operand.hbm [shape: f32[16,128], index: 0, kind: input, shape index: {}]
  %s1 = inlined_call_operand.hbm [shape: f32[16,128], index: 1, kind: input, shape index: {}]
  %s2 = inlined_call_operand.hbm [shape: f32[8,128], index: 2, kind: output, shape index: {}]
  %s3 = sld [smem:[#allocation0]]
  $region34: #{tpu_custom_call.1} parent=0
    _
  %s5 = ssub.s32 1, %s3
  %s6 = scalar_select 0, %s5, %s3
  $region1: #{tpu_custom_call.1} parent=0
    #allocation3 [shape = 'u8[8192]{0}', space=vmem, size = 0x2000, scoped, tag = 'input window, operand 0, single buffered']
    #allocation4 [shape = 's32[1]{0}', space=sflag, size = 0x4, scoped, tag = 'scoped memory for tpu_custom_call.1']
    #allocation5 [shape = 's32[1]{0}', space=sflag, size = 0x4, scoped, tag = 'scoped memory for tpu_custom_call.1']
    #allocation6 [shape = 'u8[8192]{0}', space=vmem, size = 0x2000, scoped, tag = 'input window, operand 1, single buffered']
    #allocation7 [shape = 's32[1]{0}', space=sflag, size = 0x4, scoped, tag = 'scoped memory for tpu_custom_call.1']
    #allocation8 [shape = 'u8[4096]{0}', space=vmem, size = 0x1000, scoped, tag = 'output window, operand 0, single buffered']
    %7 = vsyncpa [#allocation4], 0
    %8 = vsyncpa [#allocation7], 0
    %9 = vsyncpa [#allocation5], 0
    // Predicated region
    $region2: #{tpu_custom_call.1} parent=1 // pred_check
      _
    $region3: #{tpu_custom_call.1} parent=1 // pred_check_branch
      %11 = sbr.rel (0) target = $region5
    $region4: #{tpu_custom_call.1} parent=1 // pred_region
      %s12 = sadd.s32 0, 0
      %p13 = scmp.lt.s32.totalorder %s12, 0
      %s14 = scalar_select %p13, %s12, 0
      %s15 = smul.u32 2, %s14
      %s17 = ssub.s32 256, 256
      %18 = vsyncadd [#allocation4], %s17
      %s19 = smul.addr %s15, 128
      %s20 = scalar_lea.hbm %s0, %s19
      %s21 = sshll.u32 [#allocation3], 4
      %s22 = int_to_ptr.vmem [resolvable:$true] %s21
      %27 = dma.hbm_to_vmem [thread:$0]  %s20, 256, %s22, [#allocation4], 128, 128, 8
    $region5: #{tpu_custom_call.1} parent=1 // pred_fallthru
      _
    // Predicated region
    $region6: #{tpu_custom_call.1} parent=1 // pred_check
      _
    $region7: #{tpu_custom_call.1} parent=1 // pred_check_branch
      %29 = sbr.rel (0) target = $region9
    $region8: #{tpu_custom_call.1} parent=1 // pred_region
      %s30 = sadd.s32 0, 0
      %p31 = scmp.lt.s32.totalorder %s30, 0
      %s32 = scalar_select %p31, %s30, 0
      %s33 = smul.u32 2, %s32
      %s35 = ssub.s32 256, 256
      %36 = vsyncadd [#allocation7], %s35
      %s37 = smul.addr %s33, 128
      %s38 = scalar_lea.hbm %s1, %s37
      %s39 = sshll.u32 [#allocation6], 4
      %s40 = int_to_ptr.vmem [resolvable:$true] %s39
      %45 = dma.hbm_to_vmem [thread:$0]  %s38, 256, %s40, [#allocation7], 128, 128, 8
    $region9: #{tpu_custom_call.1} parent=1 // pred_fallthru
      _
    // Predicated region
    $region10: #{tpu_custom_call.1} parent=1 // pred_check
      _
    $region11: #{tpu_custom_call.1} parent=1 // pred_check_branch
      %47 = sbr.rel (0) target = $region13
    $region12: #{tpu_custom_call.1} parent=1 // pred_region
      %48 = dma.done [#allocation4], 256
    $region13: #{tpu_custom_call.1} parent=1 // pred_fallthru
      _
    // Predicated region
    $region14: #{tpu_custom_call.1} parent=1 // pred_check
      _
    $region15: #{tpu_custom_call.1} parent=1 // pred_check_branch
      %50 = sbr.rel (0) target = $region17
    $region16: #{tpu_custom_call.1} parent=1 // pred_region
      %51 = dma.done [#allocation7], 256
    $region17: #{tpu_custom_call.1} parent=1 // pred_fallthru
      _
    %s52 = sadd.s32 0, 0
    %p53 = scmp.lt.s32.totalorder %s52, 0
    %s54 = scalar_select %p53, %s52, 0
    %s55 = smul.u32 2, %s54
    %s56 = sadd.s32 0, 0
    %p57 = scmp.lt.s32.totalorder %s56, 0
    %s58 = scalar_select %p57, %s56, 0
    %s59 = smul.u32 2, %s58
    %p60 = scmp.eq.s32.totalorder 0, 0
    // Predicated region
    $region18: #{tpu_custom_call.1} parent=1 // pred_check
      %p61 = pneg %p60
    $region19: #{tpu_custom_call.1} parent=1 // pred_check_branch
      %63 = sbr.rel (%p61) target = $region21
    $region20: #{tpu_custom_call.1} parent=1 // pred_region
      %64 = vst [vmem:[#allocation2] sm:$0xff] 0.0
    $region21: #{tpu_custom_call.1} parent=1 // pred_fallthru
      _
    %v65 = vld [vmem:[#allocation6] sm:$0xff]
    %v66 = vld [vmem:[#allocation6 + $0x8] sm:$0xff]
    %v67 = vld [vmem:[#allocation3] sm:$0xff]
    %v68 = vld [vmem:[#allocation3 + $0x8] sm:$0xff]
    %v69 = vsub.f32 %v65, %v67
    %v70 = vsub.f32 %v66, %v68
    %v71 = vmul.f32 %v69, %v69
    %v72 = vmul.f32 %v70, %v70
    %v73 = vld [vmem:[#allocation2] sm:$0xff]
    %v74 = vadd.f32 %v71, %v72
    %v75 = vadd.f32 %v73, %v74
    %76 = vst [vmem:[#allocation2] sm:$0xff] %v75
    // Predicated region
    $region22: #{tpu_custom_call.1} parent=1 // pred_check
      %p77 = pneg %p60
    $region23: #{tpu_custom_call.1} parent=1 // pred_check_branch
      %79 = sbr.rel (%p77) target = $region25
    $region24: #{tpu_custom_call.1} parent=1 // pred_region
      %v80 = vld [vmem:[#allocation2] sm:$0xff]
      %81 = vst [vmem:[#allocation8] sm:$0xff] %v80
    $region25: #{tpu_custom_call.1} parent=1 // pred_fallthru
      _
    // Predicated region
    $region26: #{tpu_custom_call.1} parent=1 // pred_check
      _
    $region27: #{tpu_custom_call.1} parent=1 // pred_check_branch
      %83 = sbr.rel (0) target = $region29
    $region28: #{tpu_custom_call.1} parent=1 // pred_region
      %s85 = ssub.s32 128, 128
      %86 = vsyncadd [#allocation5], %s85
      %s88 = sshll.u32 [#allocation8], 4
      %s89 = int_to_ptr.vmem [resolvable:$true] %s88
      %91 = dma.vmem_to_hbm [thread:$0]  %s89, 128, %s2, [#allocation5]
    $region29: #{tpu_custom_call.1} parent=1 // pred_fallthru
      _
    // Predicated region
    $region30: #{tpu_custom_call.1} parent=1 // pred_check
      _
    $region31: #{tpu_custom_call.1} parent=1 // pred_check_branch
      %93 = sbr.rel (0) target = $region33
    $region32: #{tpu_custom_call.1} parent=1 // pred_region
      %94 = dma.done [#allocation5], 128
    $region33: #{tpu_custom_call.1} parent=1 // pred_fallthru
      _
    %95 = vsyncpa [#allocation4], 1
    %96 = vsyncpa [#allocation7], 1
    %97 = vsyncpa [#allocation5], 1

</llo_original>
